<compile_context>
chip_gen: v7x
topology: tpu7x:2x2x1
jax: 0.10.0
libtpu: 0.0.40
codegen_flags: <defaults>
</compile_context>

<pallas_src>
import functools

import jax
import jax.numpy as jnp
from jax import lax
from jax.experimental import pallas as pl
from jax.experimental.pallas import tpu as pltpu

LN_EPS = 1e-5      # PyTorch nn.LayerNorm default
LANE = 128         # hidden dims and output padded to this many lanes
SUB = 16           # sublane granularity for batch tiles (bf16 out tile = (16,128))
TB_CAP = 512       # max batch rows per grid step; working set stays << VMEM


def _round_up(x, m):
    return (x + m - 1) // m * m


def _choose_tiling(B):
    """Pick (batch tile, padded batch)."""
    b = _round_up(max(B, SUB), SUB)
    # Enough steps to keep each tile <= TB_CAP, and >= 2 steps once the batch
    # is large enough to be worth splitting across v7x's two TensorCores.
    n_steps = max((b + TB_CAP - 1) // TB_CAP, 2 if b >= 256 else 1)
    tb = _round_up((b + n_steps - 1) // n_steps, SUB)
    b_pad = _round_up(b, tb)
    return int(tb), int(b_pad)


def _layernorm(h, gamma, beta, true_width):
    """Fused single-pass LayerNorm over the last dim.

    `h` is lane-padded to a multiple of 128 with EXACT zeros on padded lanes,
    so sum / sum-of-squares only see the real values; the divisor is the
    static true width.  gamma=0, beta=0 on padded lanes re-zero them.
    """
    inv_n = 1.0 / float(true_width)
    s1 = jnp.sum(h, axis=-1, keepdims=True)
    s2 = jnp.sum(h * h, axis=-1, keepdims=True)
    mean = s1 * inv_n
    var = s2 * inv_n - mean * mean              # biased var, matches PyTorch
    inv = lax.rsqrt(var + LN_EPS)
    return (h - mean) * (inv * gamma) + beta


def actor_kernel(x_ref,
                 w1_ref, ln1_ref,
                 w2_ref, ln2_ref,
                 w3_ref, b3_ref,
                 out_ref,
                 *, fc1_dims, fc2_dims):
    x = x_ref[...]                                        # [TB, IN] f32

    # fc1 -> LayerNorm -> ReLU   (ln rows: 0=bias, 1=gamma, 2=beta)
    ln1 = ln1_ref[...]
    h = jnp.dot(x.astype(jnp.bfloat16), w1_ref[...],
                preferred_element_type=jnp.float32) + ln1[0:1, :]
    h = _layernorm(h, ln1[1:2, :], ln1[2:3, :], fc1_dims)
    h = jnp.maximum(h, 0.0)

    # fc2 -> LayerNorm -> ReLU
    ln2 = ln2_ref[...]
    h = jnp.dot(h.astype(jnp.bfloat16), w2_ref[...],
                preferred_element_type=jnp.float32) + ln2[0:1, :]
    h = _layernorm(h, ln2[1:2, :], ln2[2:3, :], fc2_dims)
    h = jnp.maximum(h, 0.0)

    # mu -> tanh   (w3/b3 zero-padded to LANE columns -> lane-dense store)
    a = jnp.dot(h.astype(jnp.bfloat16), w3_ref[...],
                preferred_element_type=jnp.float32) + b3_ref[...]
    out_ref[...] = jnp.tanh(a).astype(out_ref.dtype)


def actor_forward(state, params):
    """state: [B, input_dim] f32.  params: dict from init_params().  Returns f32 [B, n_actions]."""
    B, input_dim = state.shape
    w1, ln1 = params["w1"], params["ln1"]
    w2, ln2 = params["w2"], params["ln2"]
    w3, b3 = params["w3"], params["b3"]
    fc1_dims = params["fc1_dims"]
    fc2_dims = params["fc2_dims"]
    n_actions = params["n_actions"]
    H1P, H2P = w1.shape[1], w2.shape[1]

    TB, B_pad = _choose_tiling(B)
    if B_pad != B:
        state = jnp.pad(state, ((0, B_pad - B), (0, 0)))
    grid = (B_pad // TB,)

    resident = lambda i: (0, 0)   # constant block index: weights fetched once

    kernel = functools.partial(actor_kernel, fc1_dims=fc1_dims, fc2_dims=fc2_dims)

    flops = 2 * B_pad * (input_dim * H1P + H1P * H2P + H2P * LANE)
    transcendentals = B_pad * (2 + LANE)               # 2 rsqrt + tanh row
    bytes_accessed = (4 * state.size                    # f32 state
                      + 2 * (w1.size + w2.size + w3.size)   # bf16 weights
                      + 4 * (ln1.size + ln2.size + b3.size)  # f32 ln/bias
                      + 2 * B_pad * LANE)               # bf16 output

    out = pl.pallas_call(
        kernel,
        out_shape=jax.ShapeDtypeStruct((B_pad, LANE), jnp.bfloat16),
        grid=grid,
        in_specs=[
            pl.BlockSpec((TB, input_dim), lambda i: (i, 0)),
            pl.BlockSpec((input_dim, H1P), resident),
            pl.BlockSpec((3, H1P), resident),
            pl.BlockSpec((H1P, H2P), resident),
            pl.BlockSpec((3, H2P), resident),
            pl.BlockSpec((H2P, LANE), resident),
            pl.BlockSpec((1, LANE), resident),
        ],
        out_specs=pl.BlockSpec((TB, LANE), lambda i: (i, 0)),
        compiler_params=pltpu.CompilerParams(
            dimension_semantics=("parallel",)),
        cost_estimate=pl.CostEstimate(
            flops=int(flops),
            transcendentals=int(transcendentals),
            bytes_accessed=int(bytes_accessed)),
    )(state, w1, ln1, w2, ln2, w3, b3)

    return out[:B, :n_actions].astype(jnp.float32)


def init_params(key, input_dim, fc1_dims, fc2_dims, n_actions):
    """Deterministic init mirroring the PyTorch module's uniform bounds."""
    ks = jax.random.split(key, 6)

    # PyTorch: f = 1/sqrt(weight.size(0)) = 1/sqrt(out_features)
    f1 = 1.0 / float(fc1_dims) ** 0.5
    f2 = 1.0 / float(fc2_dims) ** 0.5
    f3 = 0.003

    # Linear weights stored pre-transposed as [in, out], f32 masters.
    w1 = jax.random.uniform(ks[0], (input_dim, fc1_dims), jnp.float32, -f1, f1)
    b1 = jax.random.uniform(ks[1], (fc1_dims,), jnp.float32, -f1, f1)
    w2 = jax.random.uniform(ks[2], (fc1_dims, fc2_dims), jnp.float32, -f2, f2)
    b2 = jax.random.uniform(ks[3], (fc2_dims,), jnp.float32, -f2, f2)
    w3 = jax.random.uniform(ks[4], (fc2_dims, n_actions), jnp.float32, -f3, f3)
    b3 = jax.random.uniform(ks[5], (n_actions,), jnp.float32, -f3, f3)

    H1P = _round_up(fc1_dims, LANE)
    H2P = _round_up(fc2_dims, LANE)

    # Lane-dense zero-padded, bf16 MXU operands (padded entries are exact 0).
    w1p = jnp.zeros((input_dim, H1P), jnp.float32).at[:, :fc1_dims].set(w1)
    w2p = jnp.zeros((H1P, H2P), jnp.float32).at[:fc1_dims, :fc2_dims].set(w2)
    w3p = jnp.zeros((H2P, LANE), jnp.float32).at[:fc2_dims, :n_actions].set(w3)
    w1p, w2p, w3p = (w.astype(jnp.bfloat16) for w in (w1p, w2p, w3p))

    # Pack (bias, gamma, beta) per layer; padded lanes: bias=0, gamma=0, beta=0.
    ln1 = jnp.zeros((3, H1P), jnp.float32)
    ln1 = ln1.at[0, :fc1_dims].set(b1).at[1, :fc1_dims].set(1.0)
    ln2 = jnp.zeros((3, H2P), jnp.float32)
    ln2 = ln2.at[0, :fc2_dims].set(b2).at[1, :fc2_dims].set(1.0)

    b3p = jnp.zeros((1, LANE), jnp.float32).at[0, :n_actions].set(b3)

    return dict(w1=w1p, ln1=ln1, w2=w2p, ln2=ln2, w3=w3p, b3=b3p,
                fc1_dims=fc1_dims, fc2_dims=fc2_dims, n_actions=n_actions,
                ref=dict(w1=w1, b1=b1, w2=w2, b2=b2, w3=w3, b3=b3))


def reference_forward(state, params):
    """Pure-JAX f32 reference (LayerNorm default gamma=1, beta=0)."""
    r = params["ref"]

    def ln(h):
        mean = jnp.mean(h, axis=-1, keepdims=True)
        var = jnp.mean((h - mean) ** 2, axis=-1, keepdims=True)
        return (h - mean) * lax.rsqrt(var + LN_EPS)

    h = state @ r["w1"] + r["b1"]
    h = jnp.maximum(ln(h), 0.0)
    h = h @ r["w2"] + r["b2"]
    h = jnp.maximum(ln(h), 0.0)
    return jnp.tanh(h @ r["w3"] + r["b3"])


if __name__ == "__main__":
    key = jax.random.PRNGKey(0)
    k_state, k_state2, k_params = jax.random.split(key, 3)

    input_dim = 32      # input_dims = [32]
    fc1_dims = 64
    fc2_dims = 64
    n_actions = 8
    params = init_params(k_params, input_dim, fc1_dims, fc2_dims, n_actions)

    # Small batch (single grid step).
    batch = 8
    state = jax.random.normal(k_state, (batch, input_dim), jnp.float32)
    out = jax.block_until_ready(actor_forward(state, params))
    ref = reference_forward(state, params)
    assert out.shape == (batch, n_actions)
    # bf16 MXU operands + bf16 output store -> loosened tolerance vs f32 ref.
    assert jnp.allclose(out, ref, atol=5e-3, rtol=5e-2), (
        float(jnp.max(jnp.abs(out - ref))))

    # Larger batch: exercises batch padding and the >=2-step (dual-TC) grid.
    batch2 = 272
    state2 = jax.random.normal(k_state2, (batch2, input_dim), jnp.float32)
    out2 = jax.block_until_ready(actor_forward(state2, params))
    ref2 = reference_forward(state2, params)
    assert out2.shape == (batch2, n_actions)
    assert jnp.allclose(out2, ref2, atol=5e-3, rtol=5e-2), (
        float(jnp.max(jnp.abs(out2 - ref2))))

    # TODO(synk): Adam optimizer step and checkpoint save/load from the PyTorch
    # module are host-side training utilities, not part of the forward pass.
    print("KERNEL_OK")
</pallas_src>

<mosaic_0001>
module attributes {stable_mosaic.version = 11 : i64} {
  func.func @actor_kernel(%arg0: i32, %arg1: memref<16x32xf32, #tpu.memory_space<vmem>>, %arg2: memref<32x128xbf16, #tpu.memory_space<vmem>>, %arg3: memref<3x128xf32, #tpu.memory_space<vmem>>, %arg4: memref<128x128xbf16, #tpu.memory_space<vmem>>, %arg5: memref<3x128xf32, #tpu.memory_space<vmem>>, %arg6: memref<128x128xbf16, #tpu.memory_space<vmem>>, %arg7: memref<1x128xf32, #tpu.memory_space<vmem>>, %arg8: memref<16x128xbf16, #tpu.memory_space<vmem>>) attributes {dimension_semantics = [#tpu.dimension_semantics<parallel>], iteration_bounds = array<i64: 1>, scalar_prefetch = 0 : i64, scratch_operands = 0 : i64, tpu.core_type = #tpu.core_type<tc>, window_params = [{transform_indices = @transform_0, window_bounds = array<i64: 16, 32>}, {pipeline_mode = #tpu.pipeline_mode<synchronous>, transform_indices = @transform_1, window_bounds = array<i64: 32, 128>}, {pipeline_mode = #tpu.pipeline_mode<synchronous>, transform_indices = @transform_2, window_bounds = array<i64: 3, 128>}, {pipeline_mode = #tpu.pipeline_mode<synchronous>, transform_indices = @transform_3, window_bounds = array<i64: 128, 128>}, {pipeline_mode = #tpu.pipeline_mode<synchronous>, transform_indices = @transform_4, window_bounds = array<i64: 3, 128>}, {pipeline_mode = #tpu.pipeline_mode<synchronous>, transform_indices = @transform_5, window_bounds = array<i64: 128, 128>}, {pipeline_mode = #tpu.pipeline_mode<synchronous>, transform_indices = @transform_6, window_bounds = array<i64: 1, 128>}, {transform_indices = @transform_7, window_bounds = array<i64: 16, 128>}]} {
    %c0 = arith.constant 0 : index
    %c0_0 = arith.constant 0 : index
    %0 = vector.load %arg1[%c0, %c0_0] : memref<16x32xf32, #tpu.memory_space<vmem>>, vector<16x32xf32>
    %c0_1 = arith.constant 0 : index
    %c0_2 = arith.constant 0 : index
    %1 = vector.load %arg3[%c0_1, %c0_2] : memref<3x128xf32, #tpu.memory_space<vmem>>, vector<3x128xf32>
    %2 = arith.truncf %0 : vector<16x32xf32> to vector<16x32xbf16>
    %c0_3 = arith.constant 0 : index
    %c0_4 = arith.constant 0 : index
    %3 = vector.load %arg2[%c0_3, %c0_4] : memref<32x128xbf16, #tpu.memory_space<vmem>>, vector<32x128xbf16>
    %cst = arith.constant dense<0.000000e+00> : vector<16x128xf32>
    %4 = tpu.matmul %2, %3, %cst {dimension_numbers = #tpu.dot_dimension_numbers<[1], [0], [0], [1], [0, 0, 1, 1], [], []>} : vector<16x32xbf16>, vector<32x128xbf16>, vector<16x128xf32> -> vector<16x128xf32>
    %5 = vector.extract_strided_slice %1 {offsets = [0, 0], sizes = [1, 128], strides = [1, 1]} : vector<3x128xf32> to vector<1x128xf32>
    %6 = vector.broadcast %5 : vector<1x128xf32> to vector<16x128xf32>
    %7 = arith.addf %4, %6 : vector<16x128xf32>
    %8 = vector.extract_strided_slice %1 {offsets = [1, 0], sizes = [1, 128], strides = [1, 1]} : vector<3x128xf32> to vector<1x128xf32>
    %9 = vector.extract_strided_slice %1 {offsets = [2, 0], sizes = [1, 128], strides = [1, 1]} : vector<3x128xf32> to vector<1x128xf32>
    %cst_5 = arith.constant dense<0.000000e+00> : vector<16xf32>
    %10 = vector.multi_reduction <add>, %7, %cst_5 [1] : vector<16x128xf32> to vector<16xf32>
    %11 = vector.shape_cast %10 : vector<16xf32> to vector<16x1xf32>
    %12 = arith.mulf %7, %7 : vector<16x128xf32>
    %cst_6 = arith.constant dense<0.000000e+00> : vector<16xf32>
    %13 = vector.multi_reduction <add>, %12, %cst_6 [1] : vector<16x128xf32> to vector<16xf32>
    %14 = vector.shape_cast %13 : vector<16xf32> to vector<16x1xf32>
    %cst_7 = arith.constant 1.562500e-02 : f32
    %15 = vector.broadcast %cst_7 : f32 to vector<16x1xf32>
    %16 = arith.mulf %11, %15 : vector<16x1xf32>
    %cst_8 = arith.constant 1.562500e-02 : f32
    %17 = vector.broadcast %cst_8 : f32 to vector<16x1xf32>
    %18 = arith.mulf %14, %17 : vector<16x1xf32>
    %19 = arith.mulf %16, %16 : vector<16x1xf32>
    %20 = arith.subf %18, %19 : vector<16x1xf32>
    %cst_9 = arith.constant 9.99999974E-6 : f32
    %21 = vector.broadcast %cst_9 : f32 to vector<16x1xf32>
    %22 = arith.addf %20, %21 : vector<16x1xf32>
    %23 = math.rsqrt %22 : vector<16x1xf32>
    %24 = vector.broadcast %16 : vector<16x1xf32> to vector<16x128xf32>
    %25 = arith.subf %7, %24 : vector<16x128xf32>
    %26 = vector.broadcast %23 : vector<16x1xf32> to vector<16x128xf32>
    %27 = vector.broadcast %8 : vector<1x128xf32> to vector<16x128xf32>
    %28 = arith.mulf %26, %27 : vector<16x128xf32>
    %29 = arith.mulf %25, %28 : vector<16x128xf32>
    %30 = vector.broadcast %9 : vector<1x128xf32> to vector<16x128xf32>
    %31 = arith.addf %29, %30 : vector<16x128xf32>
    %cst_10 = arith.constant 0.000000e+00 : f32
    %32 = vector.broadcast %cst_10 : f32 to vector<16x128xf32>
    %33 = arith.maximumf %31, %32 : vector<16x128xf32>
    %c0_11 = arith.constant 0 : index
    %c0_12 = arith.constant 0 : index
    %34 = vector.load %arg5[%c0_11, %c0_12] : memref<3x128xf32, #tpu.memory_space<vmem>>, vector<3x128xf32>
    %35 = arith.truncf %33 : vector<16x128xf32> to vector<16x128xbf16>
    %c0_13 = arith.constant 0 : index
    %c0_14 = arith.constant 0 : index
    %36 = vector.load %arg4[%c0_13, %c0_14] : memref<128x128xbf16, #tpu.memory_space<vmem>>, vector<128x128xbf16>
    %cst_15 = arith.constant dense<0.000000e+00> : vector<16x128xf32>
    %37 = tpu.matmul %35, %36, %cst_15 {dimension_numbers = #tpu.dot_dimension_numbers<[1], [0], [0], [1], [0, 0, 1, 1], [], []>} : vector<16x128xbf16>, vector<128x128xbf16>, vector<16x128xf32> -> vector<16x128xf32>
    %38 = vector.extract_strided_slice %34 {offsets = [0, 0], sizes = [1, 128], strides = [1, 1]} : vector<3x128xf32> to vector<1x128xf32>
    %39 = vector.broadcast %38 : vector<1x128xf32> to vector<16x128xf32>
    %40 = arith.addf %37, %39 : vector<16x128xf32>
    %41 = vector.extract_strided_slice %34 {offsets = [1, 0], sizes = [1, 128], strides = [1, 1]} : vector<3x128xf32> to vector<1x128xf32>
    %42 = vector.extract_strided_slice %34 {offsets = [2, 0], sizes = [1, 128], strides = [1, 1]} : vector<3x128xf32> to vector<1x128xf32>
    %cst_16 = arith.constant dense<0.000000e+00> : vector<16xf32>
    %43 = vector.multi_reduction <add>, %40, %cst_16 [1] : vector<16x128xf32> to vector<16xf32>
    %44 = vector.shape_cast %43 : vector<16xf32> to vector<16x1xf32>
    %45 = arith.mulf %40, %40 : vector<16x128xf32>
    %cst_17 = arith.constant dense<0.000000e+00> : vector<16xf32>
    %46 = vector.multi_reduction <add>, %45, %cst_17 [1] : vector<16x128xf32> to vector<16xf32>
    %47 = vector.shape_cast %46 : vector<16xf32> to vector<16x1xf32>
    %cst_18 = arith.constant 1.562500e-02 : f32
    %48 = vector.broadcast %cst_18 : f32 to vector<16x1xf32>
    %49 = arith.mulf %44, %48 : vector<16x1xf32>
    %cst_19 = arith.constant 1.562500e-02 : f32
    %50 = vector.broadcast %cst_19 : f32 to vector<16x1xf32>
    %51 = arith.mulf %47, %50 : vector<16x1xf32>
    %52 = arith.mulf %49, %49 : vector<16x1xf32>
    %53 = arith.subf %51, %52 : vector<16x1xf32>
    %cst_20 = arith.constant 9.99999974E-6 : f32
    %54 = vector.broadcast %cst_20 : f32 to vector<16x1xf32>
    %55 = arith.addf %53, %54 : vector<16x1xf32>
    %56 = math.rsqrt %55 : vector<16x1xf32>
    %57 = vector.broadcast %49 : vector<16x1xf32> to vector<16x128xf32>
    %58 = arith.subf %40, %57 : vector<16x128xf32>
    %59 = vector.broadcast %56 : vector<16x1xf32> to vector<16x128xf32>
    %60 = vector.broadcast %41 : vector<1x128xf32> to vector<16x128xf32>
    %61 = arith.mulf %59, %60 : vector<16x128xf32>
    %62 = arith.mulf %58, %61 : vector<16x128xf32>
    %63 = vector.broadcast %42 : vector<1x128xf32> to vector<16x128xf32>
    %64 = arith.addf %62, %63 : vector<16x128xf32>
    %cst_21 = arith.constant 0.000000e+00 : f32
    %65 = vector.broadcast %cst_21 : f32 to vector<16x128xf32>
    %66 = arith.maximumf %64, %65 : vector<16x128xf32>
    %67 = arith.truncf %66 : vector<16x128xf32> to vector<16x128xbf16>
    %c0_22 = arith.constant 0 : index
    %c0_23 = arith.constant 0 : index
    %68 = vector.load %arg6[%c0_22, %c0_23] : memref<128x128xbf16, #tpu.memory_space<vmem>>, vector<128x128xbf16>
    %cst_24 = arith.constant dense<0.000000e+00> : vector<16x128xf32>
    %69 = tpu.matmul %67, %68, %cst_24 {dimension_numbers = #tpu.dot_dimension_numbers<[1], [0], [0], [1], [0, 0, 1, 1], [], []>} : vector<16x128xbf16>, vector<128x128xbf16>, vector<16x128xf32> -> vector<16x128xf32>
    %c0_25 = arith.constant 0 : index
    %c0_26 = arith.constant 0 : index
    %70 = vector.load %arg7[%c0_25, %c0_26] : memref<1x128xf32, #tpu.memory_space<vmem>>, vector<1x128xf32>
    %71 = vector.broadcast %70 : vector<1x128xf32> to vector<16x128xf32>
    %72 = arith.addf %69, %71 : vector<16x128xf32>
    %73 = math.tanh %72 : vector<16x128xf32>
    %74 = arith.truncf %73 : vector<16x128xf32> to vector<16x128xbf16>
    %c0_27 = arith.constant 0 : index
    %c0_28 = arith.constant 0 : index
    %75 = vector.load %arg8[%c0_27, %c0_28] : memref<16x128xbf16, #tpu.memory_space<vmem>>, vector<16x128xbf16>
    tpu.vector_store %arg8[%c0_27, %c0_28], %74 {strides = array<i32>} : memref<16x128xbf16, #tpu.memory_space<vmem>>, vector<16x128xbf16>,
    return
  }
  func.func @transform_0(%arg0: i32) -> (i32, i32) {
    %c0_i32 = arith.constant 0 : i32
    %c0_i32_0 = arith.constant 0 : i32
    return %arg0, %c0_i32 : i32, i32
  }
  func.func @transform_1(%arg0: i32) -> (i32, i32) {
    %c0_i32 = arith.constant 0 : i32
    %c0_i32_0 = arith.constant 0 : i32
    %c0_i32_1 = arith.constant 0 : i32
    return %c0_i32, %c0_i32_0 : i32, i32
  }
  func.func @transform_2(%arg0: i32) -> (i32, i32) {
    %c0_i32 = arith.constant 0 : i32
    %c0_i32_0 = arith.constant 0 : i32
    %c0_i32_1 = arith.constant 0 : i32
    return %c0_i32, %c0_i32_0 : i32, i32
  }
  func.func @transform_3(%arg0: i32) -> (i32, i32) {
    %c0_i32 = arith.constant 0 : i32
    %c0_i32_0 = arith.constant 0 : i32
    %c0_i32_1 = arith.constant 0 : i32
    return %c0_i32, %c0_i32_0 : i32, i32
  }
  func.func @transform_4(%arg0: i32) -> (i32, i32) {
    %c0_i32 = arith.constant 0 : i32
    %c0_i32_0 = arith.constant 0 : i32
    %c0_i32_1 = arith.constant 0 : i32
    return %c0_i32, %c0_i32_0 : i32, i32
  }
  func.func @transform_5(%arg0: i32) -> (i32, i32) {
    %c0_i32 = arith.constant 0 : i32
    %c0_i32_0 = arith.constant 0 : i32
    %c0_i32_1 = arith.constant 0 : i32
    return %c0_i32, %c0_i32_0 : i32, i32
  }
  func.func @transform_6(%arg0: i32) -> (i32, i32) {
    %c0_i32 = arith.constant 0 : i32
    %c0_i32_0 = arith.constant 0 : i32
    %c0_i32_1 = arith.constant 0 : i32
    return %c0_i32, %c0_i32_0 : i32, i32
  }
  func.func @transform_7(%arg0: i32) -> (i32, i32) {
    %c0_i32 = arith.constant 0 : i32
    %c0_i32_0 = arith.constant 0 : i32
    return %arg0, %c0_i32 : i32, i32
  }
}

</mosaic_0001>

<llo_original>
// kernel: tpu_custom_call.1
$region0: #{tpu_custom_call.1}
  #allocation0 [shape = 'u32[]', space=smem, size = 0x4, offset = 0x4, fixed_abs, tag = 'smem constant byte address 0x4 - core index']
  #allocation1 [shape = 'u32[144,128]{1,0:T(1,128)}', space=vmem, size = 0x12000, scoped, tag = 'internal scratch']
  %s0 = inlined_call_operand.hbm [shape: f32[16,32], index: 0, kind: input, shape index: {}]
  %s1 = inlined_call_operand.hbm [shape: bf16[32,128], index: 1, kind: input, shape index: {}]
  %s2 = inlined_call_operand.vmem [shape: f32[3,128], index: 2, kind: input, shape index: {}]
  %s3 = inlined_call_operand.hbm [shape: bf16[128,128], index: 3, kind: input, shape index: {}]
  %s4 = inlined_call_operand.vmem [shape: f32[3,128], index: 4, kind: input, shape index: {}]
  %s5 = inlined_call_operand.hbm [shape: bf16[128,128], index: 5, kind: input, shape index: {}]
  %s6 = inlined_call_operand.vmem [shape: f32[1,128], index: 6, kind: input, shape index: {}]
  %s7 = inlined_call_operand.hbm [shape: bf16[16,128], index: 7, kind: output, shape index: {}]
  %s8 = sld [smem:[#allocation0]]
  $region54: #{tpu_custom_call.1} parent=0
    _
  %s10 = ssub.s32 1, %s8
  %s11 = scalar_select 0, %s10, %s8
  $region1: #{tpu_custom_call.1} parent=0
    #allocation2 [shape = 'u8[8192]{0}', space=vmem, size = 0x2000, scoped, tag = 'input window, operand 0, single buffered']
    #allocation3 [shape = 's32[1]{0}', space=sflag, size = 0x4, scoped, tag = 'scoped memory for tpu_custom_call.1']
    #allocation4 [shape = 's32[1]{0}', space=sflag, size = 0x4, scoped, tag = 'scoped memory for tpu_custom_call.1']
    #allocation5 [shape = 'u8[8192]{0}', space=vmem, size = 0x2000, scoped, tag = 'input window, operand 1, single buffered']
    #allocation6 [shape = 's32[1]{0}', space=sflag, size = 0x4, scoped, tag = 'scoped memory for tpu_custom_call.1']
    #allocation7 [shape = 'u8[32768]{0}', space=vmem, size = 0x8000, scoped, tag = 'input window, operand 3, single buffered']
    #allocation8 [shape = 'u8[32768]{0}', space=vmem, size = 0x8000, scoped, tag = 'input window, operand 5, single buffered']
    #allocation9 [shape = 's32[1]{0}', space=sflag, size = 0x4, scoped, tag = 'scoped memory for tpu_custom_call.1']
    #allocation10 [shape = 'u8[4096]{0}', space=vmem, size = 0x1000, scoped, tag = 'output window, operand 0, single buffered']
    %12 = vsyncpa [#allocation3], 0
    %13 = vsyncpa [#allocation6], 0
    %14 = vsyncpa [#allocation9], 0
    %15 = vsyncpa [#allocation4], 0
    // Predicated region
    $region2: #{tpu_custom_call.1} parent=1 // pred_check
      _
    $region3: #{tpu_custom_call.1} parent=1 // pred_check_branch
      %17 = sbr.rel (0) target = $region5
    $region4: #{tpu_custom_call.1} parent=1 // pred_region
      %s19 = ssub.s32 256, 256
      %20 = vsyncadd [#allocation3], %s19
      %s21 = sshll.u32 [#allocation2], 4
      %s22 = int_to_ptr.vmem [resolvable:$true] %s21
      %27 = dma.hbm_to_vmem [thread:$0]  %s0, 256, %s22, [#allocation3], 128, 128, 8
    $region5: #{tpu_custom_call.1} parent=1 // pred_fallthru
      _
    // Predicated region
    $region6: #{tpu_custom_call.1} parent=1 // pred_check
      _
    $region7: #{tpu_custom_call.1} parent=1 // pred_check_branch
      %29 = sbr.rel (0) target = $region9
    $region8: #{tpu_custom_call.1} parent=1 // pred_region
      %s31 = ssub.s32 256, 256
      %32 = vsyncadd [#allocation6], %s31
      %s33 = sshll.u32 [#allocation5], 4
      %s34 = int_to_ptr.vmem [resolvable:$true] %s33
      %39 = dma.hbm_to_vmem [thread:$0]  %s1, 256, %s34, [#allocation6], 64, 64, 4
    $region9: #{tpu_custom_call.1} parent=1 // pred_fallthru
      _
    // Predicated region
    $region10: #{tpu_custom_call.1} parent=1 // pred_check
      _
    $region11: #{tpu_custom_call.1} parent=1 // pred_check_branch
      %41 = sbr.rel (0) target = $region13
    $region12: #{tpu_custom_call.1} parent=1 // pred_region
      _
    $region13: #{tpu_custom_call.1} parent=1 // pred_fallthru
      _
    // Predicated region
    $region14: #{tpu_custom_call.1} parent=1 // pred_check
      _
    $region15: #{tpu_custom_call.1} parent=1 // pred_check_branch
      %43 = sbr.rel (0) target = $region17
    $region16: #{tpu_custom_call.1} parent=1 // pred_region
      %s45 = ssub.s32 1024, 1024
      %46 = vsyncadd [#allocation6], %s45
      %s47 = sshll.u32 [#allocation7], 4
      %s48 = int_to_ptr.vmem [resolvable:$true] %s47
      %53 = dma.hbm_to_vmem [thread:$0]  %s3, 1024, %s48, [#allocation6], 64, 64, 4
    $region17: #{tpu_custom_call.1} parent=1 // pred_fallthru
      _
    // Predicated region
    $region18: #{tpu_custom_call.1} parent=1 // pred_check
      _
    $region19: #{tpu_custom_call.1} parent=1 // pred_check_branch
      %55 = sbr.rel (0) target = $region21
    $region20: #{tpu_custom_call.1} parent=1 // pred_region
      _
    $region21: #{tpu_custom_call.1} parent=1 // pred_fallthru
      _
    // Predicated region
    $region22: #{tpu_custom_call.1} parent=1 // pred_check
      _
    $region23: #{tpu_custom_call.1} parent=1 // pred_check_branch
      %57 = sbr.rel (0) target = $region25
    $region24: #{tpu_custom_call.1} parent=1 // pred_region
      %s59 = ssub.s32 1024, 1024
      %60 = vsyncadd [#allocation9], %s59
      %s61 = sshll.u32 [#allocation8], 4
      %s62 = int_to_ptr.vmem [resolvable:$true] %s61
      %67 = dma.hbm_to_vmem [thread:$0]  %s5, 1024, %s62, [#allocation9], 64, 64, 4
    $region25: #{tpu_custom_call.1} parent=1 // pred_fallthru
      _
    // Predicated region
    $region26: #{tpu_custom_call.1} parent=1 // pred_check
      _
    $region27: #{tpu_custom_call.1} parent=1 // pred_check_branch
      %69 = sbr.rel (0) target = $region29
    $region28: #{tpu_custom_call.1} parent=1 // pred_region
      _
    $region29: #{tpu_custom_call.1} parent=1 // pred_fallthru
      _
    // Predicated region
    $region30: #{tpu_custom_call.1} parent=1 // pred_check
      _
    $region31: #{tpu_custom_call.1} parent=1 // pred_check_branch
      %71 = sbr.rel (0) target = $region33
    $region32: #{tpu_custom_call.1} parent=1 // pred_region
      %72 = dma.done [#allocation3], 256
    $region33: #{tpu_custom_call.1} parent=1 // pred_fallthru
      _
    // Predicated region
    $region34: #{tpu_custom_call.1} parent=1 // pred_check
      _
    $region35: #{tpu_custom_call.1} parent=1 // pred_check_branch
      %74 = sbr.rel (0) target = $region37
    $region36: #{tpu_custom_call.1} parent=1 // pred_region
      %75 = dma.done [#allocation6], 256
    $region37: #{tpu_custom_call.1} parent=1 // pred_fallthru
      _
    // Predicated region
    $region38: #{tpu_custom_call.1} parent=1 // pred_check
      _
    $region39: #{tpu_custom_call.1} parent=1 // pred_check_branch
      %77 = sbr.rel (0) target = $region41
    $region40: #{tpu_custom_call.1} parent=1 // pred_region
      %78 = dma.done [#allocation6], 1024
    $region41: #{tpu_custom_call.1} parent=1 // pred_fallthru
      _
    // Predicated region
    $region42: #{tpu_custom_call.1} parent=1 // pred_check
      _
    $region43: #{tpu_custom_call.1} parent=1 // pred_check_branch
      %80 = sbr.rel (0) target = $region45
    $region44: #{tpu_custom_call.1} parent=1 // pred_region
      %81 = dma.done [#allocation9], 1024
    $region45: #{tpu_custom_call.1} parent=1 // pred_fallthru
      _
    %v83 = vld [vmem:[#allocation2] sm:$0xff]
    %v84 = vld [vmem:[#allocation2 + $0x8] sm:$0xff]
    %v85 = vld [vmem:[%s2] sm:$0x7]
    %v86 = vpack.c.bf16 %v84, %v83
    %v87 = vld [vmem:[#allocation5] sm:$0xf]
    %v88 = vld [vmem:[#allocation5 + $0x4] sm:$0xf]
    %v89 = vld [vmem:[#allocation5 + $0x8] sm:$0xf]
    %v90 = vld [vmem:[#allocation5 + $0xc] sm:$0xf]
    %v91 = vlaneseq
    %v92 = vshrl.u32 %v91, 7
    %v93 = vsub.s32 0, %v92
    %v94 = vrot.slane %v85, %v93
    %v99 = vunpack.c.l.b16 %v87
    %v100 = vunpack.c.l.b16 %v88
    %v101 = vunpack.c.l.b16 %v89
    %v102 = vunpack.c.l.b16 %v90
    %v103 = vpack.c.b16 %v100, %v99
    %v104 = vpack.c.b16 %v102, %v101
    %vm107 = vcmask 261120
    %v109 = vsel %vm107, %v86, 0
    %111 = vmatprep.subr.bf16.mxu0 0
    %112 = vmatpush1.bf16.msra.mxu0 %v103
    %113 = vmatprep.subr.bf16.mxu0 0
    %114 = vmatpush1.bf16.msra.mxu0 %v104
    %115 = vmatprep.subr.bf16.mxu0 0
    %116 = vmatpush1.bf16.msra.mxu0 0
    %117 = vmatprep.subr.bf16.mxu0 0
    %118 = vmatpush1.bf16.msra.mxu0 0
    %119 = vmatprep.subr.bf16.mxu0 0
    %120 = vmatpush1.bf16.msra.mxu0 0
    %121 = vmatprep.subr.bf16.mxu0 0
    %122 = vmatpush1.bf16.msra.mxu0 0
    %123 = vmatprep.subr.bf16.mxu0 0
    %124 = vmatpush1.bf16.msra.mxu0 0
    %125 = vmatprep.subr.bf16.mxu0 0
    %126 = vmatpush1.bf16.msra.mxu0 0
    %127 = vmatprep.subr.bf16.mxu0 0
    %128 = vmatpush1.bf16.msra.mxu0 0
    %129 = vmatprep.subr.bf16.mxu0 0
    %130 = vmatpush1.bf16.msra.mxu0 0
    %131 = vmatprep.subr.bf16.mxu0 0
    %132 = vmatpush1.bf16.msra.mxu0 0
    %133 = vmatprep.subr.bf16.mxu0 0
    %134 = vmatpush1.bf16.msra.mxu0 0
    %135 = vmatprep.subr.bf16.mxu0 0
    %136 = vmatpush1.bf16.msra.mxu0 0
    %137 = vmatprep.subr.bf16.mxu0 0
    %138 = vmatpush1.bf16.msra.mxu0 0
    %139 = vmatprep.subr.bf16.mxu0 0
    %140 = vmatpush1.bf16.msra.mxu0 0
    %141 = vmatprep.subr.bf16.mxu0 0
    %142 = vmatpush1.bf16.msra.mxu0 0
    %143 = vmatprep.mubr.bf16.mxu0 0
    %144 = vmatmul.mubr.bf16.gmra.mrb[0].mxu0 %v109
    %v145 = vpop.f32.mrb[0].mxu0
    %v146 = vadd.f32 %v94, %v145
    %v147 = vpop.f32.mrb[0].mxu0
    %v148 = vpop.f32.mrb[0].mxu0
    %v149 = vadd.f32 %v94, %v148
    %v150 = vpop.f32.mrb[0].mxu0
    %151 = vdwg.mxu0
    %152 = vadd.xlane.f32.xlu0 %v146
    %v153 = vpop.xlane.xlu0 %152
    %154 = vadd.xlane.f32.xlu0 %v149
    %v155 = vpop.xlane.xlu0 %154
    %v156 = vmul.f32 %v146, %v146
    %v157 = vmul.f32 %v149, %v149
    %158 = vadd.xlane.f32.xlu0 %v156
    %v159 = vpop.xlane.xlu0 %158
    %160 = vadd.xlane.f32.xlu0 %v157
    %v161 = vpop.xlane.xlu0 %160
    %v162 = vmul.f32 %v153, 0.015625
    %v163 = vmul.f32 %v155, 0.015625
    %v164 = vmul.f32 %v159, 0.015625
    %v165 = vmul.f32 %v161, 0.015625
    %v166 = vmul.f32 %v162, %v162
    %v167 = vmul.f32 %v163, %v163
    %v168 = vsub.f32 %v164, %v166
    %v169 = vsub.f32 %v165, %v167
    %v170 = vadd.f32 %v168, 1e-05
    %v171 = vadd.f32 %v169, 1e-05
    %v172 = vrsqrt.pop %v170
    %v173 = vrsqrt.pop %v171
    %v174 = vsub.f32 %v146, %v162
    %v175 = vsub.f32 %v149, %v163
    %v176 = vlaneseq
    %v177 = vshrl.u32 %v176, 7
    %v178 = vsub.s32 1, %v177
    %v179 = vrot.slane %v85, %v178
    %v180 = vmul.f32 %v172, %v179
    %v181 = vmul.f32 %v173, %v179
    %v182 = vmul.f32 %v174, %v180
    %v183 = vmul.f32 %v175, %v181
    %v184 = vlaneseq
    %v185 = vshrl.u32 %v184, 7
    %v186 = vsub.s32 2, %v185
    %v187 = vrot.slane %v85, %v186
    %v188 = vadd.f32 %v182, %v187
    %v189 = vadd.f32 %v183, %v187
    %v190 = vmax.f32 %v188, 0.0
    %v191 = vmax.f32 %v189, 0.0
    %v192 = vld [vmem:[%s4] sm:$0x7]
    %v193 = vpack.c.bf16 %v191, %v190
    %v194 = vld [vmem:[#allocation7] sm:$0xf]
    %v195 = vld [vmem:[#allocation7 + $0x4] sm:$0xf]
    %v196 = vld [vmem:[#allocation7 + $0x8] sm:$0xf]
    %v197 = vld [vmem:[#allocation7 + $0xc] sm:$0xf]
    %v198 = vld [vmem:[#allocation7 + $0x10] sm:$0xf]
    %v199 = vld [vmem:[#allocation7 + $0x14] sm:$0xf]
    %v200 = vld [vmem:[#allocation7 + $0x18] sm:$0xf]
    %v201 = vld [vmem:[#allocation7 + $0x1c] sm:$0xf]
    %v202 = vld [vmem:[#allocation7 + $0x20] sm:$0xf]
    %v203 = vld [vmem:[#allocation7 + $0x24] sm:$0xf]
    %v204 = vld [vmem:[#allocation7 + $0x28] sm:$0xf]
    %v205 = vld [vmem:[#allocation7 + $0x2c] sm:$0xf]
    %v206 = vld [vmem:[#allocation7 + $0x30] sm:$0xf]
    %v207 = vld [vmem:[#allocation7 + $0x34] sm:$0xf]
    %v208 = vld [vmem:[#allocation7 + $0x38] sm:$0xf]
    %v209 = vld [vmem:[#allocation7 + $0x3c] sm:$0xf]
    %v210 = vlaneseq
    %v211 = vshrl.u32 %v210, 7
    %v212 = vsub.s32 0, %v211
    %v213 = vrot.slane %v192, %v212
    %v230 = vunpack.c.l.b16 %v194
    %v231 = vunpack.c.l.b16 %v195
    %v232 = vunpack.c.l.b16 %v196
    %v233 = vunpack.c.l.b16 %v197
    %v234 = vunpack.c.l.b16 %v198
    %v235 = vunpack.c.l.b16 %v199
    %v236 = vunpack.c.l.b16 %v200
    %v237 = vunpack.c.l.b16 %v201
    %v238 = vunpack.c.l.b16 %v202
    %v239 = vunpack.c.l.b16 %v203
    %v240 = vunpack.c.l.b16 %v204
    %v241 = vunpack.c.l.b16 %v205
    %v242 = vunpack.c.l.b16 %v206
    %v243 = vunpack.c.l.b16 %v207
    %v244 = vunpack.c.l.b16 %v208
    %v245 = vunpack.c.l.b16 %v209
    %v246 = vpack.c.b16 %v231, %v230
    %v247 = vpack.c.b16 %v233, %v232
    %v248 = vpack.c.b16 %v235, %v234
    %v249 = vpack.c.b16 %v237, %v236
    %v250 = vpack.c.b16 %v239, %v238
    %v251 = vpack.c.b16 %v241, %v240
    %v252 = vpack.c.b16 %v243, %v242
    %v253 = vpack.c.b16 %v245, %v244
    %262 = vmatprep.subr.bf16.mxu0 0
    %263 = vmatpush1.bf16.msra.mxu0 %v246
    %264 = vmatprep.subr.bf16.mxu0 0
    %265 = vmatpush1.bf16.msra.mxu0 %v247
    %266 = vmatprep.subr.bf16.mxu0 0
    %267 = vmatpush1.bf16.msra.mxu0 %v248
    %268 = vmatprep.subr.bf16.mxu0 0
    %269 = vmatpush1.bf16.msra.mxu0 %v249
    %270 = vmatprep.subr.bf16.mxu0 0
    %271 = vmatpush1.bf16.msra.mxu0 %v250
    %272 = vmatprep.subr.bf16.mxu0 0
    %273 = vmatpush1.bf16.msra.mxu0 %v251
    %274 = vmatprep.subr.bf16.mxu0 0
    %275 = vmatpush1.bf16.msra.mxu0 %v252
    %276 = vmatprep.subr.bf16.mxu0 0
    %277 = vmatpush1.bf16.msra.mxu0 %v253
    %278 = vmatprep.subr.bf16.mxu0 0
    %279 = vmatpush1.bf16.msra.mxu0 0
    %280 = vmatprep.subr.bf16.mxu0 0
    %281 = vmatpush1.bf16.msra.mxu0 0
    %282 = vmatprep.subr.bf16.mxu0 0
    %283 = vmatpush1.bf16.msra.mxu0 0
    %284 = vmatprep.subr.bf16.mxu0 0
    %285 = vmatpush1.bf16.msra.mxu0 0
    %286 = vmatprep.subr.bf16.mxu0 0
    %287 = vmatpush1.bf16.msra.mxu0 0
    %288 = vmatprep.subr.bf16.mxu0 0
    %289 = vmatpush1.bf16.msra.mxu0 0
    %290 = vmatprep.subr.bf16.mxu0 0
    %291 = vmatpush1.bf16.msra.mxu0 0
    %292 = vmatprep.subr.bf16.mxu0 0
    %293 = vmatpush1.bf16.msra.mxu0 0
    %294 = vmatprep.mubr.bf16.mxu0 0
    %295 = vmatmul.mubr.bf16.gmra.mrb[0].mxu0 %v193
    %v296 = vpop.f32.mrb[0].mxu0
    %v297 = vadd.f32 %v213, %v296
    %v298 = vpop.f32.mrb[0].mxu0
    %v299 = vpop.f32.mrb[0].mxu0
    %v300 = vadd.f32 %v213, %v299
    %v301 = vpop.f32.mrb[0].mxu0
    %302 = vdwg.mxu0
    %303 = vadd.xlane.f32.xlu0 %v297
    %v304 = vpop.xlane.xlu0 %303
    %305 = vadd.xlane.f32.xlu0 %v300
    %v306 = vpop.xlane.xlu0 %305
    %v307 = vmul.f32 %v297, %v297
    %v308 = vmul.f32 %v300, %v300
    %309 = vadd.xlane.f32.xlu0 %v307
    %v310 = vpop.xlane.xlu0 %309
    %311 = vadd.xlane.f32.xlu0 %v308
    %v312 = vpop.xlane.xlu0 %311
    %v313 = vmul.f32 %v304, 0.015625
    %v314 = vmul.f32 %v306, 0.015625
    %v315 = vmul.f32 %v310, 0.015625
    %v316 = vmul.f32 %v312, 0.015625
    %v317 = vmul.f32 %v313, %v313
    %v318 = vmul.f32 %v314, %v314
    %v319 = vsub.f32 %v315, %v317
    %v320 = vsub.f32 %v316, %v318
    %v321 = vadd.f32 %v319, 1e-05
    %v322 = vadd.f32 %v320, 1e-05
    %v323 = vrsqrt.pop %v321
    %v324 = vrsqrt.pop %v322
    %v325 = vsub.f32 %v297, %v313
    %v326 = vsub.f32 %v300, %v314
    %v327 = vlaneseq
    %v328 = vshrl.u32 %v327, 7
    %v329 = vsub.s32 1, %v328
    %v330 = vrot.slane %v192, %v329
    %v331 = vmul.f32 %v323, %v330
    %v332 = vmul.f32 %v324, %v330
    %v333 = vmul.f32 %v325, %v331
    %v334 = vmul.f32 %v326, %v332
    %v335 = vlaneseq
    %v336 = vshrl.u32 %v335, 7
    %v337 = vsub.s32 2, %v336
    %v338 = vrot.slane %v192, %v337
    %v339 = vadd.f32 %v333, %v338
    %v340 = vadd.f32 %v334, %v338
    %v341 = vmax.f32 %v339, 0.0
    %v342 = vmax.f32 %v340, 0.0
    %v343 = vpack.c.bf16 %v342, %v341
    %v344 = vld [vmem:[#allocation8] sm:$0xf]
    %v345 = vld [vmem:[#allocation8 + $0x4] sm:$0xf]
    %v346 = vld [vmem:[#allocation8 + $0x8] sm:$0xf]
    %v347 = vld [vmem:[#allocation8 + $0xc] sm:$0xf]
    %v348 = vld [vmem:[#allocation8 + $0x10] sm:$0xf]
    %v349 = vld [vmem:[#allocation8 + $0x14] sm:$0xf]
    %v350 = vld [vmem:[#allocation8 + $0x18] sm:$0xf]
    %v351 = vld [vmem:[#allocation8 + $0x1c] sm:$0xf]
    %v352 = vld [vmem:[#allocation8 + $0x20] sm:$0xf]
    %v353 = vld [vmem:[#allocation8 + $0x24] sm:$0xf]
    %v354 = vld [vmem:[#allocation8 + $0x28] sm:$0xf]
    %v355 = vld [vmem:[#allocation8 + $0x2c] sm:$0xf]
    %v356 = vld [vmem:[#allocation8 + $0x30] sm:$0xf]
    %v357 = vld [vmem:[#allocation8 + $0x34] sm:$0xf]
    %v358 = vld [vmem:[#allocation8 + $0x38] sm:$0xf]
    %v359 = vld [vmem:[#allocation8 + $0x3c] sm:$0xf]
    %v360 = vld [vmem:[%s6] sm:$0x1]
    %v362 = vlaneseq
    %v363 = vshrl.u32 %v362, 7
    %v364 = vsub.s32 0, %v363
    %v365 = vrot.slane %v360, %v364
    %v383 = vunpack.c.l.b16 %v344
    %v384 = vunpack.c.l.b16 %v345
    %v385 = vunpack.c.l.b16 %v346
    %v386 = vunpack.c.l.b16 %v347
    %v387 = vunpack.c.l.b16 %v348
    %v388 = vunpack.c.l.b16 %v349
    %v389 = vunpack.c.l.b16 %v350
    %v390 = vunpack.c.l.b16 %v351
    %v391 = vunpack.c.l.b16 %v352
    %v392 = vunpack.c.l.b16 %v353
    %v393 = vunpack.c.l.b16 %v354
    %v394 = vunpack.c.l.b16 %v355
    %v395 = vunpack.c.l.b16 %v356
    %v396 = vunpack.c.l.b16 %v357
    %v397 = vunpack.c.l.b16 %v358
    %v398 = vunpack.c.l.b16 %v359
    %v399 = vpack.c.b16 %v384, %v383
    %v400 = vpack.c.b16 %v386, %v385
    %v401 = vpack.c.b16 %v388, %v387
    %v402 = vpack.c.b16 %v390, %v389
    %v403 = vpack.c.b16 %v392, %v391
    %v404 = vpack.c.b16 %v394, %v393
    %v405 = vpack.c.b16 %v396, %v395
    %v406 = vpack.c.b16 %v398, %v397
    %415 = vmatprep.subr.bf16.mxu0 0
    %416 = vmatpush1.bf16.msra.mxu0 %v399
    %417 = vmatprep.subr.bf16.mxu0 0
    %418 = vmatpush1.bf16.msra.mxu0 %v400
    %419 = vmatprep.subr.bf16.mxu0 0
    %420 = vmatpush1.bf16.msra.mxu0 %v401
    %421 = vmatprep.subr.bf16.mxu0 0
    %422 = vmatpush1.bf16.msra.mxu0 %v402
    %423 = vmatprep.subr.bf16.mxu0 0
    %424 = vmatpush1.bf16.msra.mxu0 %v403
    %425 = vmatprep.subr.bf16.mxu0 0
    %426 = vmatpush1.bf16.msra.mxu0 %v404
    %427 = vmatprep.subr.bf16.mxu0 0
    %428 = vmatpush1.bf16.msra.mxu0 %v405
    %429 = vmatprep.subr.bf16.mxu0 0
    %430 = vmatpush1.bf16.msra.mxu0 %v406
    %431 = vmatprep.subr.bf16.mxu0 0
    %432 = vmatpush1.bf16.msra.mxu0 0
    %433 = vmatprep.subr.bf16.mxu0 0
    %434 = vmatpush1.bf16.msra.mxu0 0
    %435 = vmatprep.subr.bf16.mxu0 0
    %436 = vmatpush1.bf16.msra.mxu0 0
    %437 = vmatprep.subr.bf16.mxu0 0
    %438 = vmatpush1.bf16.msra.mxu0 0
    %439 = vmatprep.subr.bf16.mxu0 0
    %440 = vmatpush1.bf16.msra.mxu0 0
    %441 = vmatprep.subr.bf16.mxu0 0
    %442 = vmatpush1.bf16.msra.mxu0 0
    %443 = vmatprep.subr.bf16.mxu0 0
    %444 = vmatpush1.bf16.msra.mxu0 0
    %445 = vmatprep.subr.bf16.mxu0 0
    %446 = vmatpush1.bf16.msra.mxu0 0
    %447 = vmatprep.mubr.bf16.mxu0 0
    %448 = vmatmul.mubr.bf16.gmra.mrb[0].mxu0 %v343
    %v449 = vpop.f32.mrb[0].mxu0
    %v450 = vadd.f32 %v365, %v449
    %v451 = vpop.f32.mrb[0].mxu0
    %v452 = vpop.f32.mrb[0].mxu0
    %v453 = vadd.f32 %v365, %v452
    %v454 = vpop.f32.mrb[0].mxu0
    %455 = vdwg.mxu0
    %v456 = vtanh.pop %v450
    %v457 = vtanh.pop %v453
    %v458 = vpack.c.bf16 %v457, %v456
    %v460 = vunpack.c.l.b16 %v458
    %v461 = vunpack.c.h.b16 %v458
    %v462 = vpack.c.b16 %v460, %v460
    %v463 = vpack.c.b16 %v461, %v461
    %466 = vst [vmem:[#allocation10] sm:$0xf] %v462
    %467 = vst [vmem:[#allocation10 + $0x4] sm:$0xf] %v463
    // Predicated region
    $region46: #{tpu_custom_call.1} parent=1 // pred_check
      _
    $region47: #{tpu_custom_call.1} parent=1 // pred_check_branch
      %469 = sbr.rel (0) target = $region49
    $region48: #{tpu_custom_call.1} parent=1 // pred_region
      %s471 = ssub.s32 128, 128
      %472 = vsyncadd [#allocation4], %s471
      %s473 = sshll.u32 [#allocation10], 4
      %s474 = int_to_ptr.vmem [resolvable:$true] %s473
      %479 = dma.vmem_to_hbm [thread:$0]  %s474, 128, %s7, [#allocation4], 64, 64, 4
    $region49: #{tpu_custom_call.1} parent=1 // pred_fallthru
      _
    // Predicated region
    $region50: #{tpu_custom_call.1} parent=1 // pred_check
      _
    $region51: #{tpu_custom_call.1} parent=1 // pred_check_branch
      %481 = sbr.rel (0) target = $region53
    $region52: #{tpu_custom_call.1} parent=1 // pred_region
      %482 = dma.done [#allocation4], 128
    $region53: #{tpu_custom_call.1} parent=1 // pred_fallthru
      _
    %483 = vsyncpa [#allocation3], 1
    %484 = vsyncpa [#allocation6], 1
    %485 = vsyncpa [#allocation9], 1
    %486 = vsyncpa [#allocation4], 1

</llo_original>
